<compile_context>
chip_gen: v7x
topology: tpu7x:2x2x1
jax: 0.10.0
libtpu: 0.0.40
codegen_flags: <defaults>
</compile_context>

<pallas_src>
import jax
import jax.numpy as jnp
from jax.experimental import pallas as pl
from jax.experimental.pallas import tpu as pltpu


def _mish(x):
    # mish(x) = x * tanh(softplus(x)) = x * (t - 1) / (t + 1),  t = (1 + e^x)^2
    # Single EUP exp + one (approx, EUP-slot) reciprocal; VPU does the rest.
    e = jnp.exp(x)
    one_p_e = 1.0 + e
    t = one_p_e * one_p_e
    y = x * (t - 1.0) * pl.reciprocal(t + 1.0, approx=True)
    # Guard: for large x, t overflows to inf and y becomes NaN; mish(x) ~= x there.
    return jnp.where(x > 20.0, x, y)


def critic_kernel(state_ref, action_ref, w1s_ref, w1a_ref, w2_ref, bvec_ref,
                  out_ref):
    bv = bvec_ref[...]                 # [4, E]: rows = b1, b2, w3_row, b3(bcast)
    b1 = bv[0:1, :]
    b2 = bv[1:2, :]
    w3_row = bv[2:3, :]
    b3 = bv[3:4, 0:1]

    # fc1 on split weights: two MXU matmuls accumulated -> no lane-axis concat.
    h1 = (jnp.dot(state_ref[...], w1s_ref[...], preferred_element_type=jnp.float32)
          + jnp.dot(action_ref[...], w1a_ref[...], preferred_element_type=jnp.float32)
          + b1)
    h1 = _mish(h1)

    # fc2
    h2 = jnp.dot(h1, w2_ref[...], preferred_element_type=jnp.float32) + b2
    h2 = _mish(h2)

    # fc3 (out_features == 1): VPU multiply + XLU lane reduce instead of a
    # degenerate single-column MXU matmul.
    out = jnp.sum(h2 * w3_row, axis=-1, keepdims=True) + b3
    out_ref[...] = out.astype(out_ref.dtype)
    # NOTE: output last dim is 1 -> masked lane store; acceptable at this size.


def critic_forward(state, action, params, *, batch_tile=512):
    """state: [B, state_size], action: [B, action_size] -> [B, 1]"""
    w1s, w1a, w2, bvec = params
    B, S = state.shape
    A = action.shape[1]
    E = w2.shape[0]
    out_shape = jax.ShapeDtypeStruct((B, 1), jnp.float32)

    if B >= 2 * batch_tile and B % batch_tile == 0 and batch_tile % 8 == 0:
        # Large-batch path: pipeline input tiles over a 1-D batch grid; weights
        # and bvec stay resident (block (0, 0) every step). Batch axis is
        # "parallel" so v7x's two TensorCores split the tiles (no-op on v5e/v6e).
        tb = batch_tile
        return pl.pallas_call(
            critic_kernel,
            out_shape=out_shape,
            grid_spec=pltpu.PrefetchScalarGridSpec(
                num_scalar_prefetch=0,
                grid=(B // tb,),
                in_specs=[
                    pl.BlockSpec((tb, S), lambda i: (i, 0)),
                    pl.BlockSpec((tb, A), lambda i: (i, 0)),
                    pl.BlockSpec((S, E), lambda i: (0, 0)),
                    pl.BlockSpec((A, E), lambda i: (0, 0)),
                    pl.BlockSpec((E, E), lambda i: (0, 0)),
                    pl.BlockSpec((4, E), lambda i: (0, 0)),
                ],
                out_specs=pl.BlockSpec((tb, 1), lambda i: (i, 0)),
            ),
            compiler_params=pltpu.CompilerParams(
                dimension_semantics=("parallel",)),
        )(state, action, w1s, w1a, w2, bvec)

    # Small-batch path: whole arrays resident in VMEM, single invocation.
    vmem = pl.BlockSpec(memory_space=pltpu.VMEM)
    return pl.pallas_call(
        critic_kernel,
        out_shape=out_shape,
        in_specs=[vmem] * 6,
        out_specs=vmem,
    )(state, action, w1s, w1a, w2, bvec)


def pack_params(w1, b1, w2, b2, w3, b3, state_size):
    """Split W1 along its input dim; pack small vectors into one [4, E] array."""
    w1s = w1[:state_size, :]
    w1a = w1[state_size:, :]
    E = w2.shape[1]
    bvec = jnp.stack([
        b1,                                   # row 0: fc1 bias
        b2,                                   # row 1: fc2 bias
        w3[:, 0],                             # row 2: fc3 weight row
        jnp.full((E,), b3[0], jnp.float32),   # row 3: fc3 bias (broadcast)
    ], axis=0).astype(jnp.float32)
    return (w1s, w1a, w2, bvec)


def init_critic_params(key, state_size, action_size, n_embed):
    """PyTorch-style Linear init (uniform +-1/sqrt(fan_in)), pre-packed."""
    def linear(key, fan_in, fan_out):
        kw, kb = jax.random.split(key)
        bound = 1.0 / jnp.sqrt(jnp.float32(fan_in))
        w = jax.random.uniform(kw, (fan_in, fan_out), jnp.float32, -bound, bound)
        b = jax.random.uniform(kb, (fan_out,), jnp.float32, -bound, bound)
        return w, b

    k1, k2, k3 = jax.random.split(key, 3)
    d_in = state_size + action_size
    w1, b1 = linear(k1, d_in, n_embed)
    w2, b2 = linear(k2, n_embed, n_embed)
    w3, b3 = linear(k3, n_embed, 1)
    return pack_params(w1, b1, w2, b2, w3, b3, state_size)


def critic_reference(state, action, params):
    """Pure-JAX reference matching the PyTorch module semantics."""
    w1s, w1a, w2, bvec = params
    b1, b2, w3_row = bvec[0], bvec[1], bvec[2]
    b3 = bvec[3, 0]
    w1 = jnp.concatenate([w1s, w1a], axis=0)
    x = jnp.concatenate([state, action], axis=-1)
    h = jax.nn.mish(x @ w1 + b1)
    h = jax.nn.mish(h @ w2 + b2)
    return h @ w3_row[:, None] + b3


if __name__ == "__main__":
    state_size, action_size, n_embed = 12, 4, 32

    key = jax.random.PRNGKey(0)
    k_state, k_action, k_params = jax.random.split(key, 3)
    params = init_critic_params(k_params, state_size, action_size, n_embed)

    # Tolerance is set for the approximate-EUP reciprocal in Mish (~1e-4 rel).
    TOL = 2e-3

    # --- small batch: single-shot whole-array-in-VMEM path ------------------
    batch = 8
    state = jax.random.normal(k_state, (batch, state_size), jnp.float32)
    action = jax.random.normal(k_action, (batch, action_size), jnp.float32)

    out = jax.block_until_ready(critic_forward(state, action, params))
    ref = critic_reference(state, action, params)
    assert out.shape == (batch, 1), out.shape
    assert jnp.allclose(out, ref, atol=TOL, rtol=TOL), (
        float(jnp.max(jnp.abs(out - ref))))

    # --- large batch: batch-grid (pipelined, parallel axis) path -------------
    big = 1024
    ks, ka = jax.random.split(jax.random.PRNGKey(1))
    state_b = jax.random.normal(ks, (big, state_size), jnp.float32)
    action_b = jax.random.normal(ka, (big, action_size), jnp.float32)

    out_b = jax.block_until_ready(
        critic_forward(state_b, action_b, params, batch_tile=256))
    ref_b = critic_reference(state_b, action_b, params)
    assert out_b.shape == (big, 1), out_b.shape
    assert jnp.allclose(out_b, ref_b, atol=TOL, rtol=TOL), (
        float(jnp.max(jnp.abs(out_b - ref_b))))

    print("KERNEL_OK")
</pallas_src>

<mosaic_0001>
module attributes {stable_mosaic.version = 11 : i64} {
  func.func @critic_kernel(%arg0: memref<8x12xf32, #tpu.memory_space<vmem>>, %arg1: memref<8x4xf32, #tpu.memory_space<vmem>>, %arg2: memref<12x32xf32, #tpu.memory_space<vmem>>, %arg3: memref<4x32xf32, #tpu.memory_space<vmem>>, %arg4: memref<32x32xf32, #tpu.memory_space<vmem>>, %arg5: memref<4x32xf32, #tpu.memory_space<vmem>>, %arg6: memref<8x1xf32, #tpu.memory_space<vmem>>) attributes {dimension_semantics = [], scalar_prefetch = 0 : i64, scratch_operands = 0 : i64, tpu.core_type = #tpu.core_type<tc>} {
    %c0 = arith.constant 0 : index
    %c0_0 = arith.constant 0 : index
    %0 = vector.load %arg5[%c0, %c0_0] : memref<4x32xf32, #tpu.memory_space<vmem>>, vector<4x32xf32>
    %1 = vector.extract_strided_slice %0 {offsets = [0, 0], sizes = [1, 32], strides = [1, 1]} : vector<4x32xf32> to vector<1x32xf32>
    %2 = vector.extract_strided_slice %0 {offsets = [1, 0], sizes = [1, 32], strides = [1, 1]} : vector<4x32xf32> to vector<1x32xf32>
    %3 = vector.extract_strided_slice %0 {offsets = [2, 0], sizes = [1, 32], strides = [1, 1]} : vector<4x32xf32> to vector<1x32xf32>
    %4 = vector.extract_strided_slice %0 {offsets = [3, 0], sizes = [1, 1], strides = [1, 1]} : vector<4x32xf32> to vector<1x1xf32>
    %c0_1 = arith.constant 0 : index
    %c0_2 = arith.constant 0 : index
    %5 = vector.load %arg0[%c0_1, %c0_2] : memref<8x12xf32, #tpu.memory_space<vmem>>, vector<8x12xf32>
    %c0_3 = arith.constant 0 : index
    %c0_4 = arith.constant 0 : index
    %6 = vector.load %arg2[%c0_3, %c0_4] : memref<12x32xf32, #tpu.memory_space<vmem>>, vector<12x32xf32>
    %cst = arith.constant dense<0.000000e+00> : vector<8x32xf32>
    %7 = tpu.matmul %5, %6, %cst {dimension_numbers = #tpu.dot_dimension_numbers<[1], [0], [0], [1], [0, 0, 1, 1], [], []>} : vector<8x12xf32>, vector<12x32xf32>, vector<8x32xf32> -> vector<8x32xf32>
    %c0_5 = arith.constant 0 : index
    %c0_6 = arith.constant 0 : index
    %8 = vector.load %arg1[%c0_5, %c0_6] : memref<8x4xf32, #tpu.memory_space<vmem>>, vector<8x4xf32>
    %c0_7 = arith.constant 0 : index
    %c0_8 = arith.constant 0 : index
    %9 = vector.load %arg3[%c0_7, %c0_8] : memref<4x32xf32, #tpu.memory_space<vmem>>, vector<4x32xf32>
    %cst_9 = arith.constant dense<0.000000e+00> : vector<8x32xf32>
    %10 = tpu.matmul %8, %9, %cst_9 {dimension_numbers = #tpu.dot_dimension_numbers<[1], [0], [0], [1], [0, 0, 1, 1], [], []>} : vector<8x4xf32>, vector<4x32xf32>, vector<8x32xf32> -> vector<8x32xf32>
    %11 = arith.addf %7, %10 : vector<8x32xf32>
    %12 = vector.broadcast %1 : vector<1x32xf32> to vector<8x32xf32>
    %13 = arith.addf %11, %12 : vector<8x32xf32>
    %14 = math.exp %13 : vector<8x32xf32>
    %cst_10 = arith.constant 1.000000e+00 : f32
    %15 = vector.broadcast %cst_10 : f32 to vector<8x32xf32>
    %16 = arith.addf %15, %14 : vector<8x32xf32>
    %17 = arith.mulf %16, %16 : vector<8x32xf32>
    %cst_11 = arith.constant 1.000000e+00 : f32
    %18 = vector.broadcast %cst_11 : f32 to vector<8x32xf32>
    %19 = arith.subf %17, %18 : vector<8x32xf32>
    %20 = arith.mulf %13, %19 : vector<8x32xf32>
    %cst_12 = arith.constant 1.000000e+00 : f32
    %21 = vector.broadcast %cst_12 : f32 to vector<8x32xf32>
    %22 = arith.addf %17, %21 : vector<8x32xf32>
    %23 = tpu.reciprocal %22 {approx = true} : vector<8x32xf32> -> vector<8x32xf32>
    %24 = arith.mulf %20, %23 : vector<8x32xf32>
    %cst_13 = arith.constant 2.000000e+01 : f32
    %25 = vector.broadcast %cst_13 : f32 to vector<8x32xf32>
    %26 = arith.cmpf ogt, %13, %25 : vector<8x32xf32>
    %27 = arith.select %26, %13, %24 : vector<8x32xi1>, vector<8x32xf32>
    %c0_14 = arith.constant 0 : index
    %c0_15 = arith.constant 0 : index
    %28 = vector.load %arg4[%c0_14, %c0_15] : memref<32x32xf32, #tpu.memory_space<vmem>>, vector<32x32xf32>
    %cst_16 = arith.constant dense<0.000000e+00> : vector<8x32xf32>
    %29 = tpu.matmul %27, %28, %cst_16 {dimension_numbers = #tpu.dot_dimension_numbers<[1], [0], [0], [1], [0, 0, 1, 1], [], []>} : vector<8x32xf32>, vector<32x32xf32>, vector<8x32xf32> -> vector<8x32xf32>
    %30 = vector.broadcast %2 : vector<1x32xf32> to vector<8x32xf32>
    %31 = arith.addf %29, %30 : vector<8x32xf32>
    %32 = math.exp %31 : vector<8x32xf32>
    %cst_17 = arith.constant 1.000000e+00 : f32
    %33 = vector.broadcast %cst_17 : f32 to vector<8x32xf32>
    %34 = arith.addf %33, %32 : vector<8x32xf32>
    %35 = arith.mulf %34, %34 : vector<8x32xf32>
    %cst_18 = arith.constant 1.000000e+00 : f32
    %36 = vector.broadcast %cst_18 : f32 to vector<8x32xf32>
    %37 = arith.subf %35, %36 : vector<8x32xf32>
    %38 = arith.mulf %31, %37 : vector<8x32xf32>
    %cst_19 = arith.constant 1.000000e+00 : f32
    %39 = vector.broadcast %cst_19 : f32 to vector<8x32xf32>
    %40 = arith.addf %35, %39 : vector<8x32xf32>
    %41 = tpu.reciprocal %40 {approx = true} : vector<8x32xf32> -> vector<8x32xf32>
    %42 = arith.mulf %38, %41 : vector<8x32xf32>
    %cst_20 = arith.constant 2.000000e+01 : f32
    %43 = vector.broadcast %cst_20 : f32 to vector<8x32xf32>
    %44 = arith.cmpf ogt, %31, %43 : vector<8x32xf32>
    %45 = arith.select %44, %31, %42 : vector<8x32xi1>, vector<8x32xf32>
    %46 = vector.broadcast %3 : vector<1x32xf32> to vector<8x32xf32>
    %47 = arith.mulf %45, %46 : vector<8x32xf32>
    %cst_21 = arith.constant dense<0.000000e+00> : vector<8xf32>
    %48 = vector.multi_reduction <add>, %47, %cst_21 [1] : vector<8x32xf32> to vector<8xf32>
    %49 = vector.shape_cast %48 : vector<8xf32> to vector<8x1xf32>
    %50 = vector.broadcast %4 : vector<1x1xf32> to vector<8x1xf32>
    %51 = arith.addf %49, %50 : vector<8x1xf32>
    %c0_22 = arith.constant 0 : index
    %c0_23 = arith.constant 0 : index
    %52 = vector.load %arg6[%c0_22, %c0_23] : memref<8x1xf32, #tpu.memory_space<vmem>>, vector<8x1xf32>
    tpu.vector_store %arg6[%c0_22, %c0_23], %51 {strides = array<i32>} : memref<8x1xf32, #tpu.memory_space<vmem>>, vector<8x1xf32>,
    return
  }
}

</mosaic_0001>

<llo_original>
// kernel: tpu_custom_call.1
$region0: #{tpu_custom_call.1}
  #allocation0 [shape = 'u32[]', space=smem, size = 0x4, offset = 0x4, fixed_abs, tag = 'smem constant byte address 0x4 - core index']
  #allocation1 [shape = 'u32[144,128]{1,0:T(1,128)}', space=vmem, size = 0x12000, scoped, tag = 'internal scratch']
  %s0 = inlined_call_operand.hbm [shape: f32[8,12], index: 0, kind: input, shape index: {}]
  %s1 = inlined_call_operand.vmem [shape: f32[8,4], index: 1, kind: input, shape index: {}]
  %s2 = inlined_call_operand.vmem [shape: f32[12,32], index: 2, kind: input, shape index: {}]
  %s3 = inlined_call_operand.vmem [shape: f32[4,32], index: 3, kind: input, shape index: {}]
  %s4 = inlined_call_operand.hbm [shape: f32[32,32], index: 4, kind: input, shape index: {}]
  %s5 = inlined_call_operand.vmem [shape: f32[4,32], index: 5, kind: input, shape index: {}]
  %s6 = inlined_call_operand.vmem [shape: f32[8,1], index: 6, kind: output, shape index: {}]
  %s7 = sld [smem:[#allocation0]]
  $region42: #{tpu_custom_call.1} parent=0
    _
  %s9 = ssub.s32 1, %s7
  %s10 = scalar_select 0, %s9, %s7
  $region1: #{tpu_custom_call.1} parent=0
    #allocation2 [shape = 'u8[4096]{0}', space=vmem, size = 0x1000, scoped, tag = 'input window, operand 0, single buffered']
    #allocation3 [shape = 's32[1]{0}', space=sflag, size = 0x4, scoped, tag = 'scoped memory for tpu_custom_call.1']
    #allocation4 [shape = 'u8[16384]{0}', space=vmem, size = 0x4000, scoped, tag = 'input window, operand 4, single buffered']
    #allocation5 [shape = 's32[1]{0}', space=sflag, size = 0x4, scoped, tag = 'scoped memory for tpu_custom_call.1']
    %11 = vsyncpa [#allocation3], 0
    %12 = vsyncpa [#allocation5], 0
    // Predicated region
    $region2: #{tpu_custom_call.1} parent=1 // pred_check
      _
    $region3: #{tpu_custom_call.1} parent=1 // pred_check_branch
      %14 = sbr.rel (0) target = $region5
    $region4: #{tpu_custom_call.1} parent=1 // pred_region
      %s16 = ssub.s32 128, 128
      %17 = vsyncadd [#allocation3], %s16
      %s19 = sshll.u32 [#allocation2], 4
      %s20 = int_to_ptr.vmem [resolvable:$true] %s19
      %22 = dma.hbm_to_vmem [thread:$0]  %s0, 128, %s20, [#allocation3]
    $region5: #{tpu_custom_call.1} parent=1 // pred_fallthru
      _
    // Predicated region
    $region6: #{tpu_custom_call.1} parent=1 // pred_check
      _
    $region7: #{tpu_custom_call.1} parent=1 // pred_check_branch
      %24 = sbr.rel (0) target = $region9
    $region8: #{tpu_custom_call.1} parent=1 // pred_region
      _
    $region9: #{tpu_custom_call.1} parent=1 // pred_fallthru
      _
    // Predicated region
    $region10: #{tpu_custom_call.1} parent=1 // pred_check
      _
    $region11: #{tpu_custom_call.1} parent=1 // pred_check_branch
      %26 = sbr.rel (0) target = $region13
    $region12: #{tpu_custom_call.1} parent=1 // pred_region
      _
    $region13: #{tpu_custom_call.1} parent=1 // pred_fallthru
      _
    // Predicated region
    $region14: #{tpu_custom_call.1} parent=1 // pred_check
      _
    $region15: #{tpu_custom_call.1} parent=1 // pred_check_branch
      %28 = sbr.rel (0) target = $region17
    $region16: #{tpu_custom_call.1} parent=1 // pred_region
      _
    $region17: #{tpu_custom_call.1} parent=1 // pred_fallthru
      _
    // Predicated region
    $region18: #{tpu_custom_call.1} parent=1 // pred_check
      _
    $region19: #{tpu_custom_call.1} parent=1 // pred_check_branch
      %30 = sbr.rel (0) target = $region21
    $region20: #{tpu_custom_call.1} parent=1 // pred_region
      %s32 = ssub.s32 512, 512
      %33 = vsyncadd [#allocation5], %s32
      %s34 = sshll.u32 [#allocation4], 4
      %s35 = int_to_ptr.vmem [resolvable:$true] %s34
      %40 = dma.hbm_to_vmem [thread:$0]  %s4, 512, %s35, [#allocation5], 128, 128, 8
    $region21: #{tpu_custom_call.1} parent=1 // pred_fallthru
      _
    // Predicated region
    $region22: #{tpu_custom_call.1} parent=1 // pred_check
      _
    $region23: #{tpu_custom_call.1} parent=1 // pred_check_branch
      %42 = sbr.rel (0) target = $region25
    $region24: #{tpu_custom_call.1} parent=1 // pred_region
      _
    $region25: #{tpu_custom_call.1} parent=1 // pred_fallthru
      _
    // Predicated region
    $region26: #{tpu_custom_call.1} parent=1 // pred_check
      _
    $region27: #{tpu_custom_call.1} parent=1 // pred_check_branch
      %44 = sbr.rel (0) target = $region29
    $region28: #{tpu_custom_call.1} parent=1 // pred_region
      %45 = dma.done [#allocation3], 128
    $region29: #{tpu_custom_call.1} parent=1 // pred_fallthru
      _
    // Predicated region
    $region30: #{tpu_custom_call.1} parent=1 // pred_check
      _
    $region31: #{tpu_custom_call.1} parent=1 // pred_check_branch
      %47 = sbr.rel (0) target = $region33
    $region32: #{tpu_custom_call.1} parent=1 // pred_region
      %48 = dma.done [#allocation5], 512
    $region33: #{tpu_custom_call.1} parent=1 // pred_fallthru
      _
    %v49 = vld [vmem:[%s5] sm:$0xf]
    %v50 = vld [vmem:[#allocation2] sm:$0xff]
    %v51 = vld [vmem:[%s2] sm:$0xff]
    %v52 = vld [vmem:[%s2 + $0x8] sm:$0xf]
    %v53 = vld [vmem:[%s1] sm:$0xff]
    %v54 = vld [vmem:[%s3] sm:$0xf]
    %vm55 = vcmask 31744
    %v57 = vsel %vm55, %v53, 0
    %vm59 = vcmask 1043456
    %v61 = vsel %vm59, %v54, 0
    %63 = vmatprep.subr.mxu0 0.0
    %64 = vmatpush1.msra.mxu0 %v61
    %65 = vmatprep.subr.mxu0 0.0
    %66 = vmatpush1.msra.mxu0 0.0
    %67 = vmatprep.subr.mxu0 0.0
    %68 = vmatpush1.msra.mxu0 0.0
    %69 = vmatprep.subr.mxu0 0.0
    %70 = vmatpush1.msra.mxu0 0.0
    %71 = vmatprep.subr.mxu0 0.0
    %72 = vmatpush1.msra.mxu0 0.0
    %73 = vmatprep.subr.mxu0 0.0
    %74 = vmatpush1.msra.mxu0 0.0
    %75 = vmatprep.subr.mxu0 0.0
    %76 = vmatpush1.msra.mxu0 0.0
    %77 = vmatprep.subr.mxu0 0.0
    %78 = vmatpush1.msra.mxu0 0.0
    %79 = vmatprep.subr.mxu0 0.0
    %80 = vmatpush1.msra.mxu0 0.0
    %81 = vmatprep.subr.mxu0 0.0
    %82 = vmatpush1.msra.mxu0 0.0
    %83 = vmatprep.subr.mxu0 0.0
    %84 = vmatpush1.msra.mxu0 0.0
    %85 = vmatprep.subr.mxu0 0.0
    %86 = vmatpush1.msra.mxu0 0.0
    %87 = vmatprep.subr.mxu0 0.0
    %88 = vmatpush1.msra.mxu0 0.0
    %89 = vmatprep.subr.mxu0 0.0
    %90 = vmatpush1.msra.mxu0 0.0
    %91 = vmatprep.subr.mxu0 0.0
    %92 = vmatpush1.msra.mxu0 0.0
    %93 = vmatprep.subr.mxu0 0.0
    %94 = vmatpush1.msra.mxu0 0.0
    %95 = vmatprep.subr.mxu0 0.0
    %96 = vmatpush1.msra.mxu0 0.0
    %97 = vmatprep.subr.mxu0 0.0
    %98 = vmatpush1.msra.mxu0 0.0
    %99 = vmatprep.subr.mxu0 0.0
    %100 = vmatpush1.msra.mxu0 0.0
    %101 = vmatprep.subr.mxu0 0.0
    %102 = vmatpush1.msra.mxu0 0.0
    %103 = vmatprep.subr.mxu0 0.0
    %104 = vmatpush1.msra.mxu0 0.0
    %105 = vmatprep.subr.mxu0 0.0
    %106 = vmatpush1.msra.mxu0 0.0
    %107 = vmatprep.subr.mxu0 0.0
    %108 = vmatpush1.msra.mxu0 0.0
    %109 = vmatprep.subr.mxu0 0.0
    %110 = vmatpush1.msra.mxu0 0.0
    %111 = vmatprep.subr.mxu0 0.0
    %112 = vmatpush1.msra.mxu0 0.0
    %113 = vmatprep.subr.mxu0 0.0
    %114 = vmatpush1.msra.mxu0 0.0
    %115 = vmatprep.subr.mxu0 0.0
    %116 = vmatpush1.msra.mxu0 0.0
    %117 = vmatprep.subr.mxu0 0.0
    %118 = vmatpush1.msra.mxu0 0.0
    %119 = vmatprep.subr.mxu0 0.0
    %120 = vmatpush1.msra.mxu0 0.0
    %121 = vmatprep.subr.mxu0 0.0
    %122 = vmatpush1.msra.mxu0 0.0
    %123 = vmatprep.subr.mxu0 0.0
    %124 = vmatpush1.msra.mxu0 0.0
    %125 = vmatprep.subr.mxu0 0.0
    %126 = vmatpush1.msra.mxu0 0.0
    %127 = vmatprep.mubr.f32.mxu0 0.0
    %128 = vmatmul.mubr.f32.gmra.mrb[0].mxu0 %v57
    %v129 = vpop.f32.mrb[0].mxu0
    %v130 = vadd.f32 0.0, %v129
    %v131 = vpop.f32.mrb[0].mxu0
    %132 = vdwg.mxu0
    %vm133 = vcmask 97280
    %v135 = vsel %vm133, %v50, 0
    %v138 = vsel %vm59, %v52, 0
    %140 = vmatprep.subr.mxu0 0.0
    %141 = vmatpush1.msra.mxu0 %v51
    %142 = vmatprep.subr.mxu0 0.0
    %143 = vmatpush1.msra.mxu0 %v138
    %144 = vmatprep.subr.mxu0 0.0
    %145 = vmatpush1.msra.mxu0 0.0
    %146 = vmatprep.subr.mxu0 0.0
    %147 = vmatpush1.msra.mxu0 0.0
    %148 = vmatprep.subr.mxu0 0.0
    %149 = vmatpush1.msra.mxu0 0.0
    %150 = vmatprep.subr.mxu0 0.0
    %151 = vmatpush1.msra.mxu0 0.0
    %152 = vmatprep.subr.mxu0 0.0
    %153 = vmatpush1.msra.mxu0 0.0
    %154 = vmatprep.subr.mxu0 0.0
    %155 = vmatpush1.msra.mxu0 0.0
    %156 = vmatprep.subr.mxu0 0.0
    %157 = vmatpush1.msra.mxu0 0.0
    %158 = vmatprep.subr.mxu0 0.0
    %159 = vmatpush1.msra.mxu0 0.0
    %160 = vmatprep.subr.mxu0 0.0
    %161 = vmatpush1.msra.mxu0 0.0
    %162 = vmatprep.subr.mxu0 0.0
    %163 = vmatpush1.msra.mxu0 0.0
    %164 = vmatprep.subr.mxu0 0.0
    %165 = vmatpush1.msra.mxu0 0.0
    %166 = vmatprep.subr.mxu0 0.0
    %167 = vmatpush1.msra.mxu0 0.0
    %168 = vmatprep.subr.mxu0 0.0
    %169 = vmatpush1.msra.mxu0 0.0
    %170 = vmatprep.subr.mxu0 0.0
    %171 = vmatpush1.msra.mxu0 0.0
    %172 = vmatprep.subr.mxu0 0.0
    %173 = vmatpush1.msra.mxu0 0.0
    %174 = vmatprep.subr.mxu0 0.0
    %175 = vmatpush1.msra.mxu0 0.0
    %176 = vmatprep.subr.mxu0 0.0
    %177 = vmatpush1.msra.mxu0 0.0
    %178 = vmatprep.subr.mxu0 0.0
    %179 = vmatpush1.msra.mxu0 0.0
    %180 = vmatprep.subr.mxu0 0.0
    %181 = vmatpush1.msra.mxu0 0.0
    %182 = vmatprep.subr.mxu0 0.0
    %183 = vmatpush1.msra.mxu0 0.0
    %184 = vmatprep.subr.mxu0 0.0
    %185 = vmatpush1.msra.mxu0 0.0
    %186 = vmatprep.subr.mxu0 0.0
    %187 = vmatpush1.msra.mxu0 0.0
    %188 = vmatprep.subr.mxu0 0.0
    %189 = vmatpush1.msra.mxu0 0.0
    %190 = vmatprep.subr.mxu0 0.0
    %191 = vmatpush1.msra.mxu0 0.0
    %192 = vmatprep.subr.mxu0 0.0
    %193 = vmatpush1.msra.mxu0 0.0
    %194 = vmatprep.subr.mxu0 0.0
    %195 = vmatpush1.msra.mxu0 0.0
    %196 = vmatprep.subr.mxu0 0.0
    %197 = vmatpush1.msra.mxu0 0.0
    %198 = vmatprep.subr.mxu0 0.0
    %199 = vmatpush1.msra.mxu0 0.0
    %200 = vmatprep.subr.mxu0 0.0
    %201 = vmatpush1.msra.mxu0 0.0
    %202 = vmatprep.subr.mxu0 0.0
    %203 = vmatpush1.msra.mxu0 0.0
    %204 = vmatprep.mubr.f32.mxu0 0.0
    %205 = vmatmul.mubr.f32.gmra.mrb[0].mxu0 %v135
    %v206 = vpop.f32.mrb[0].mxu0
    %v207 = vadd.f32 %v130, %v206
    %v208 = vpop.f32.mrb[0].mxu0
    %209 = vdwg.mxu0
    %v210 = vlaneseq
    %v211 = vshrl.u32 %v210, 7
    %v212 = vsub.s32 0, %v211
    %v213 = vrot.slane %v49, %v212
    %v214 = vadd.f32 %v207, %v213
    %v215 = vmul.f32 %v214, 1.442695
    %v216 = vpow.pop %v215
    %v217 = vadd.f32 %v216, 1.0
    %v218 = vmul.f32 %v217, %v217
    %v219 = vsub.f32 %v218, 1.0
    %v220 = vmul.f32 %v214, %v219
    %v221 = vadd.f32 %v218, 1.0
    %v222 = vrcp.pop %v221
    %v223 = vmul.f32 %v220, %v222
    %vm224 = vcmp.gt.f32.partialorder %v214, 20.0
    %v225 = vsel %vm224, %v214, %v223
    %v226 = vld [vmem:[#allocation4] sm:$0xff]
    %v227 = vld [vmem:[#allocation4 + $0x8] sm:$0xff]
    %v228 = vld [vmem:[#allocation4 + $0x10] sm:$0xff]
    %v229 = vld [vmem:[#allocation4 + $0x18] sm:$0xff]
    %v230 = vlaneseq
    %v231 = vshrl.u32 %v230, 7
    %v232 = vsub.s32 1, %v231
    %v233 = vrot.slane %v49, %v232
    %vm234 = vcmask 261120
    %v236 = vsel %vm234, %v225, 0
    %238 = vmatprep.subr.mxu0 0.0
    %239 = vmatpush1.msra.mxu0 %v226
    %240 = vmatprep.subr.mxu0 0.0
    %241 = vmatpush1.msra.mxu0 %v227
    %242 = vmatprep.subr.mxu0 0.0
    %243 = vmatpush1.msra.mxu0 %v228
    %244 = vmatprep.subr.mxu0 0.0
    %245 = vmatpush1.msra.mxu0 %v229
    %246 = vmatprep.subr.mxu0 0.0
    %247 = vmatpush1.msra.mxu0 0.0
    %248 = vmatprep.subr.mxu0 0.0
    %249 = vmatpush1.msra.mxu0 0.0
    %250 = vmatprep.subr.mxu0 0.0
    %251 = vmatpush1.msra.mxu0 0.0
    %252 = vmatprep.subr.mxu0 0.0
    %253 = vmatpush1.msra.mxu0 0.0
    %254 = vmatprep.subr.mxu0 0.0
    %255 = vmatpush1.msra.mxu0 0.0
    %256 = vmatprep.subr.mxu0 0.0
    %257 = vmatpush1.msra.mxu0 0.0
    %258 = vmatprep.subr.mxu0 0.0
    %259 = vmatpush1.msra.mxu0 0.0
    %260 = vmatprep.subr.mxu0 0.0
    %261 = vmatpush1.msra.mxu0 0.0
    %262 = vmatprep.subr.mxu0 0.0
    %263 = vmatpush1.msra.mxu0 0.0
    %264 = vmatprep.subr.mxu0 0.0
    %265 = vmatpush1.msra.mxu0 0.0
    %266 = vmatprep.subr.mxu0 0.0
    %267 = vmatpush1.msra.mxu0 0.0
    %268 = vmatprep.subr.mxu0 0.0
    %269 = vmatpush1.msra.mxu0 0.0
    %270 = vmatprep.subr.mxu0 0.0
    %271 = vmatpush1.msra.mxu0 0.0
    %272 = vmatprep.subr.mxu0 0.0
    %273 = vmatpush1.msra.mxu0 0.0
    %274 = vmatprep.subr.mxu0 0.0
    %275 = vmatpush1.msra.mxu0 0.0
    %276 = vmatprep.subr.mxu0 0.0
    %277 = vmatpush1.msra.mxu0 0.0
    %278 = vmatprep.subr.mxu0 0.0
    %279 = vmatpush1.msra.mxu0 0.0
    %280 = vmatprep.subr.mxu0 0.0
    %281 = vmatpush1.msra.mxu0 0.0
    %282 = vmatprep.subr.mxu0 0.0
    %283 = vmatpush1.msra.mxu0 0.0
    %284 = vmatprep.subr.mxu0 0.0
    %285 = vmatpush1.msra.mxu0 0.0
    %286 = vmatprep.subr.mxu0 0.0
    %287 = vmatpush1.msra.mxu0 0.0
    %288 = vmatprep.subr.mxu0 0.0
    %289 = vmatpush1.msra.mxu0 0.0
    %290 = vmatprep.subr.mxu0 0.0
    %291 = vmatpush1.msra.mxu0 0.0
    %292 = vmatprep.subr.mxu0 0.0
    %293 = vmatpush1.msra.mxu0 0.0
    %294 = vmatprep.subr.mxu0 0.0
    %295 = vmatpush1.msra.mxu0 0.0
    %296 = vmatprep.subr.mxu0 0.0
    %297 = vmatpush1.msra.mxu0 0.0
    %298 = vmatprep.subr.mxu0 0.0
    %299 = vmatpush1.msra.mxu0 0.0
    %300 = vmatprep.subr.mxu0 0.0
    %301 = vmatpush1.msra.mxu0 0.0
    %302 = vmatprep.mubr.f32.mxu0 0.0
    %303 = vmatmul.mubr.f32.gmra.mrb[0].mxu0 %v236
    %v304 = vpop.f32.mrb[0].mxu0
    %v305 = vadd.f32 %v233, %v304
    %v306 = vpop.f32.mrb[0].mxu0
    %307 = vdwg.mxu0
    %v308 = vmul.f32 %v305, 1.442695
    %v309 = vpow.pop %v308
    %v310 = vadd.f32 %v309, 1.0
    %v311 = vmul.f32 %v310, %v310
    %v312 = vsub.f32 %v311, 1.0
    %v313 = vmul.f32 %v305, %v312
    %v314 = vadd.f32 %v311, 1.0
    %v315 = vrcp.pop %v314
    %v316 = vmul.f32 %v313, %v315
    %vm317 = vcmp.gt.f32.partialorder %v305, 20.0
    %v318 = vsel %vm317, %v305, %v316
    %v319 = vlaneseq
    %v320 = vshrl.u32 %v319, 7
    %v321 = vsub.s32 2, %v320
    %v322 = vrot.slane %v49, %v321
    %v323 = vmul.f32 %v318, %v322
    %v324 = vsel %vm234, %v323, 0.0
    %325 = vadd.xlane.f32.xlu0 %v324
    %v326 = vpop.xlane.xlu0 %325
    %v327 = vlaneseq
    %v328 = vshrl.u32 %v327, 7
    %v329 = vsub.s32 3, %v328
    %v330 = vrot.slane %v49, %v329
    %v331 = vadd.f32 %v326, %v330
    %vm332 = vcmask 7168
    %333 = vst.msk [vmem:[%s6] sm:$0xff] %vm332, %v331
    // Predicated region
    $region34: #{tpu_custom_call.1} parent=1 // pred_check
      _
    $region35: #{tpu_custom_call.1} parent=1 // pred_check_branch
      %335 = sbr.rel (0) target = $region37
    $region36: #{tpu_custom_call.1} parent=1 // pred_region
      _
    $region37: #{tpu_custom_call.1} parent=1 // pred_fallthru
      _
    // Predicated region
    $region38: #{tpu_custom_call.1} parent=1 // pred_check
      _
    $region39: #{tpu_custom_call.1} parent=1 // pred_check_branch
      %337 = sbr.rel (0) target = $region41
    $region40: #{tpu_custom_call.1} parent=1 // pred_region
      _
    $region41: #{tpu_custom_call.1} parent=1 // pred_fallthru
      _
    %338 = vsyncpa [#allocation3], 1
    %339 = vsyncpa [#allocation5], 1

</llo_original>
